<compile_context>
chip_gen: v6e
topology: v6e:2x2x1
jax: 0.10.0
libtpu: 0.0.40
codegen_flags: <defaults>
</compile_context>

<pallas_src>
import math

import jax
import jax.numpy as jnp
import numpy as np
from jax.experimental import pallas as pl
from jax.experimental.pallas import tpu as pltpu


# ---------------------------------------------------------------------------
# Frequency-index selection + DCT filter construction (deterministic, numpy)
# ---------------------------------------------------------------------------
def get_freq_indices(method):
    assert method in ['high1', 'high2', 'high4', 'high8', 'high16', 'high32',
                      'midd1', 'midd2', 'midd4', 'midd8', 'midd16', 'midd32',
                      'lowf1', 'lowf2', 'lowf4', 'lowf8', 'lowf16', 'lowf32']
    num_freq = int(method[4:])
    if 'high' in method:
        ax = [7, 7, 6, 6, 5, 7, 5, 6, 5, 4, 7, 3, 7, 4, 6, 2, 7, 3, 6, 4, 5, 1, 7, 6, 2, 5, 3, 4, 0, 7, 1, 6]
        ay = [7, 6, 7, 6, 7, 5, 6, 5, 5, 7, 4, 7, 3, 6, 4, 7, 2, 6, 3, 5, 4, 7, 1, 2, 6, 3, 5, 4, 7, 0, 6, 1]
    elif 'midd' in method:
        ax = [3, 2, 1, 0, 0, 1, 2, 3, 4, 5, 6, 7, 7, 6, 5, 4, 3, 2, 1, 2, 3, 4, 5, 6, 1, 2, 3, 4, 5, 6, 5, 4]
        ay = [3, 4, 5, 6, 7, 6, 5, 4, 3, 2, 1, 0, 1, 2, 3, 4, 5, 6, 7, 7, 6, 5, 4, 3, 4, 3, 2, 1, 0, 0, 1, 2]
    else:  # lowf
        ax = [0, 0, 1, 2, 1, 0, 0, 1, 2, 3, 4, 3, 2, 1, 0, 0, 1, 2, 3, 4, 5, 6, 5, 4, 3, 2, 1, 0, 0, 1, 2, 3]
        ay = [0, 1, 0, 0, 1, 2, 3, 2, 1, 0, 0, 1, 2, 3, 4, 5, 4, 3, 2, 1, 0, 0, 1, 2, 3, 4, 5, 6, 7, 6, 5, 4]
    return ax[:num_freq], ay[:num_freq]


def build_dct_filter(height, width, mapper_x, mapper_y, channel):
    """Exact replica of MultiSpectralDCTlayer.get_dct_filter -> (channel, H, W)."""
    assert len(mapper_x) == len(mapper_y)
    assert channel % len(mapper_x) == 0

    def bf(pos, freq, POS):
        r = math.cos(math.pi * freq * (pos + 0.5) / POS) / math.sqrt(POS)
        return r if freq == 0 else r * math.sqrt(2)

    f = np.zeros((channel, height, width), dtype=np.float32)
    c_part = channel // len(mapper_x)
    for i, (u_x, v_y) in enumerate(zip(mapper_x, mapper_y)):
        for t_x in range(height):
            for t_y in range(width):
                f[i * c_part:(i + 1) * c_part, t_x, t_y] = bf(t_x, u_x, height) * bf(t_y, v_y, width)
    return jnp.asarray(f)


def _adaptive_pool_matrix(in_size, out_size):
    """Exact F.adaptive_avg_pool2d bin layout as an (out_size, in_size) matrix."""
    m = np.zeros((out_size, in_size), dtype=np.float32)
    for i in range(out_size):
        start = (i * in_size) // out_size
        end = -(-((i + 1) * in_size) // out_size)  # ceil div
        m[i, start:end] = 1.0 / (end - start)
    return jnp.asarray(m)


def _tpu_generation():
    try:
        kind = jax.devices()[0].device_kind.lower()
    except Exception:
        return None
    for tag in ("v7", "v6", "v5"):
        if tag in kind:
            return tag
    return None


# ---------------------------------------------------------------------------
# Pallas kernels
# ---------------------------------------------------------------------------
def _fused_msa_kernel(x_ref, eff_ref, w1t_ref, w2t_ref, o_ref):
    # x_ref  : (1, C, HW)  one sample's feature slab (original dtype)
    # eff_ref: (C, HW)     effective (pooling-folded) DCT filter, f32
    # w1t_ref: (C, hid)    fc1 weight transposed   (Linear(C, hid).weight.T)
    # w2t_ref: (hid, C)    fc2 weight transposed   (Linear(hid, C).weight.T)
    # o_ref  : (1, C, HW)
    xf = x_ref[...].astype(jnp.float32)
    y = jnp.sum(xf * eff_ref[...][None], axis=2)                          # (1, C)
    h = jnp.maximum(jnp.dot(y, w1t_ref[...],
                            preferred_element_type=jnp.float32), 0.0)     # (1, hid)
    logits = jnp.dot(h, w2t_ref[...], preferred_element_type=jnp.float32)  # (1, C)
    s = 1.0 / (1.0 + jnp.exp(-logits))                                     # sigmoid, f32
    # scale stays f32; rounding happens only at the output store
    o_ref[...] = (x_ref[...] * s[:, :, None]).astype(o_ref.dtype)


def _se_mlp_kernel(y_ref, w1t_ref, w2t_ref, s_ref):
    # y_ref: (N, C) f32, s_ref: (N, C) f32 (lane-dense output)
    h = jnp.maximum(jnp.dot(y_ref[...], w1t_ref[...],
                            preferred_element_type=jnp.float32), 0.0)
    logits = jnp.dot(h, w2t_ref[...], preferred_element_type=jnp.float32)
    s_ref[...] = 1.0 / (1.0 + jnp.exp(-logits))


def _scale_apply_kernel(x_ref, s_ref, o_ref):
    # x_ref: (Rt, HWt), s_ref: (Rt, 1) f32, o_ref: (Rt, HWt)
    # single multiply-store per vreg (scale broadcast along lanes)
    o_ref[...] = (x_ref[...] * s_ref[...]).astype(o_ref.dtype)


# ---------------------------------------------------------------------------
# Wrapper
# ---------------------------------------------------------------------------
def multi_spectral_attention(x, dct_filter, w1, w2, dct_h, dct_w,
                             fused_slab_limit=2 << 20):
    n, c, h, w = x.shape
    hid = w1.shape[0]
    hw = h * w
    itemsize = x.dtype.itemsize

    # Fold adaptive average pooling (a linear map) into the DCT filter:
    # y[n,c] = sum_hw x[n,c,hw] * eff[c,hw] on the full-resolution input, so no
    # pooled or lane-padded copy of x is ever materialized in HBM.
    dct = jnp.asarray(dct_filter, jnp.float32)
    if (h, w) != (dct_h, dct_w):
        ph = _adaptive_pool_matrix(h, dct_h)        # (dct_h, h)
        pw = _adaptive_pool_matrix(w, dct_w)        # (dct_w, w)
        eff = jnp.einsum('ih,cij,jw->chw', ph, dct, pw)
    else:
        eff = dct
    eff_flat = eff.reshape(c, hw)                   # (C, HW) f32

    w1t = jnp.asarray(w1, jnp.float32).T            # (C, hid)
    w2t = jnp.asarray(w2, jnp.float32).T            # (hid, C)
    x_flat = x.reshape(n, c, hw)

    slab_bytes = c * hw * itemsize

    # ------------------------------------------------------------------
    # Fused single-pass path: x read from HBM exactly once.
    # VMEM budget @ 2 MiB slab: 2x in + 2x out + filter + f32 temps <~ 20 MiB.
    # ------------------------------------------------------------------
    if slab_bytes <= fused_slab_limit:
        # TODO(synk): for sub-128-lane HW (e.g. 7x7/14x14 maps) fold channel
        # sub-groups into the lane axis to keep vst/DMA rows lane-dense.
        out = pl.pallas_call(
            _fused_msa_kernel,
            out_shape=jax.ShapeDtypeStruct((n, c, hw), x.dtype),
            grid_spec=pltpu.PrefetchScalarGridSpec(
                num_scalar_prefetch=0,
                grid=(n,),
                in_specs=[
                    pl.BlockSpec((1, c, hw), lambda i: (i, 0, 0)),
                    pl.BlockSpec((c, hw), lambda i: (0, 0)),    # constant across grid
                    pl.BlockSpec((c, hid), lambda i: (0, 0)),   # constant across grid
                    pl.BlockSpec((hid, c), lambda i: (0, 0)),   # constant across grid
                ],
                out_specs=pl.BlockSpec((1, c, hw), lambda i: (i, 0, 0)),
            ),
            compiler_params=pltpu.CompilerParams(
                dimension_semantics=("parallel",),
                vmem_limit_bytes=32 << 20),
        )(x_flat, eff_flat, w1t, w2t)
        return out.reshape(n, c, h, w)

    # ------------------------------------------------------------------
    # Fallback two-pass path (slab too large for VMEM).
    # ------------------------------------------------------------------
    # pass 1: y via effective-filter contraction (x read once by XLA), then a
    # tiny Pallas SE-MLP kernel -> lane-dense (N, C) scale kept in f32.
    eff_use = eff_flat if x.dtype == jnp.float32 else eff_flat.astype(x.dtype)
    y = jnp.einsum('ncd,cd->nc', x_flat, eff_use,
                   preferred_element_type=jnp.float32)

    s = pl.pallas_call(
        _se_mlp_kernel,
        out_shape=jax.ShapeDtypeStruct((n, c), jnp.float32),
        grid_spec=pltpu.PrefetchScalarGridSpec(
            num_scalar_prefetch=0,
            grid=(1,),
            in_specs=[
                pl.BlockSpec((n, c), lambda i: (0, 0)),
                pl.BlockSpec((c, hid), lambda i: (0, 0)),
                pl.BlockSpec((hid, c), lambda i: (0, 0)),
            ],
            out_specs=pl.BlockSpec((n, c), lambda i: (0, 0)),
        ),
    )(y, w1t, w2t)

    # pass 2: stream x exactly once, multiply by per-(n,c) scale.
    rows = n * c
    x2 = x_flat.reshape(rows, hw)   # free reshape (contiguous)
    s2 = s.reshape(rows, 1)         # f32 scale

    gen = _tpu_generation()
    if gen == "v7":
        target = 4 << 20            # 3.2 TB/s: bigger blocks amortize per-step overhead
        vmem_limit = 32 << 20       # explicit scoped-VMEM budget (64 MiB physical)
    else:
        target = 2 << 20            # ~85% roofline on v6e; safe under v5e's 16 MiB scope
        vmem_limit = None

    sub = max(8, 32 // itemsize)    # sublane multiple: 8 f32, 16 bf16, 32 int8/fp8
    row_bytes = hw * itemsize
    if sub * row_bytes <= target:
        hwt = hw
        rt = min(rows, max(sub, ((target // row_bytes) // sub) * sub))
    else:
        # huge rows: shrink lane tile so a `sub`-row block still fits the target
        hwt = max(128, ((target // (sub * itemsize)) // 128) * 128)
        rt = sub
    # guarantee >= 2 grid blocks when possible so both v7x TensorCores get work
    if rows > sub and pl.cdiv(rows, rt) * pl.cdiv(hw, hwt) < 2:
        rt = max(sub, (((rows + 1) // 2 + sub - 1) // sub) * sub)
    grid2 = (pl.cdiv(rows, rt), pl.cdiv(hw, hwt))

    cparams = dict(dimension_semantics=("parallel", "parallel"))
    if vmem_limit is not None:
        cparams["vmem_limit_bytes"] = vmem_limit

    out2 = pl.pallas_call(
        _scale_apply_kernel,
        out_shape=jax.ShapeDtypeStruct((rows, hw), x.dtype),
        grid_spec=pltpu.PrefetchScalarGridSpec(
            num_scalar_prefetch=0,
            grid=grid2,
            in_specs=[
                pl.BlockSpec((rt, hwt), lambda i, j: (i, j)),
                pl.BlockSpec((rt, 1), lambda i, j: (i, 0)),
            ],
            out_specs=pl.BlockSpec((rt, hwt), lambda i, j: (i, j)),
        ),
        compiler_params=pltpu.CompilerParams(**cparams),
    )(x2, s2)
    return out2.reshape(n, c, h, w)


# ---------------------------------------------------------------------------
# Demo / correctness check
# ---------------------------------------------------------------------------
if __name__ == "__main__":
    # Module config (channel must be divisible by num_freq=16 and >= reduction).
    N, C = 2, 32
    dct_h, dct_w = 16, 16
    reduction = 16
    freq_sel_method = 'high16'
    hid = C // reduction

    # DCT filter buffer (deterministic, from the module's formula).
    mapper_x, mapper_y = get_freq_indices(freq_sel_method)
    mapper_x = [mx * (dct_h // 8) for mx in mapper_x]
    mapper_y = [my * (dct_w // 8) for my in mapper_y]
    dct_filter = build_dct_filter(dct_h, dct_w, mapper_x, mapper_y, C)

    # Deterministic parameter init (PyTorch Linear default U(-1/sqrt(fan_in), +)),
    # bias=False as in the module.
    key = jax.random.PRNGKey(0)
    kx1, kx2, k1, k2 = jax.random.split(key, 4)
    b1 = 1.0 / math.sqrt(C)
    b2 = 1.0 / math.sqrt(hid)
    w1 = jax.random.uniform(k1, (hid, C), jnp.float32, minval=-b1, maxval=b1)  # Linear(C, hid)
    w2 = jax.random.uniform(k2, (C, hid), jnp.float32, minval=-b2, maxval=b2)  # Linear(hid, C)

    def reference(x):
        _, _, hh, ww = x.shape
        if (hh, ww) != (dct_h, dct_w):
            ph = _adaptive_pool_matrix(hh, dct_h)
            pw = _adaptive_pool_matrix(ww, dct_w)
            xp = jnp.einsum('ih,nchw,jw->ncij', ph, x, pw)
        else:
            xp = x
        y = jnp.sum(xp * dct_filter[None], axis=(2, 3))
        h_fc = jnp.maximum(y @ w1.T, 0.0)
        sc = jax.nn.sigmoid(h_fc @ w2.T)
        return x * sc[:, :, None, None]

    def check(out, ref, tag):
        if not np.allclose(np.asarray(out), np.asarray(ref), atol=1e-4, rtol=1e-4):
            raise AssertionError(f"Pallas kernel output mismatch vs reference ({tag})")

    # Case 1: H,W == dct size (no adaptive pooling), fused single-pass path.
    x_a = jax.random.normal(kx1, (N, C, 16, 16), jnp.float32)
    out_a = jax.block_until_ready(multi_spectral_attention(x_a, dct_filter, w1, w2, dct_h, dct_w))
    check(out_a, reference(x_a), "fused / no-pool")

    # Case 2: H,W != dct size (pooling folded into the effective filter), fused path.
    x_b = jax.random.normal(kx2, (N, C, 24, 20), jnp.float32)
    out_b = jax.block_until_ready(multi_spectral_attention(x_b, dct_filter, w1, w2, dct_h, dct_w))
    check(out_b, reference(x_b), "fused / pooled")

    # Cases 3 & 4: force the two-pass fallback path (SE-MLP kernel + streaming apply).
    out_c = jax.block_until_ready(
        multi_spectral_attention(x_a, dct_filter, w1, w2, dct_h, dct_w, fused_slab_limit=0))
    check(out_c, reference(x_a), "fallback / no-pool")
    out_d = jax.block_until_ready(
        multi_spectral_attention(x_b, dct_filter, w1, w2, dct_h, dct_w, fused_slab_limit=0))
    check(out_d, reference(x_b), "fallback / pooled")

    print("KERNEL_OK")
</pallas_src>

<mosaic_0001>
module attributes {stable_mosaic.version = 11 : i64} {
  func.func @_fused_msa_kernel(%arg0: i32, %arg1: memref<1x32x256xf32, #tpu.memory_space<vmem>>, %arg2: memref<32x256xf32, #tpu.memory_space<vmem>>, %arg3: memref<32x2xf32, #tpu.memory_space<vmem>>, %arg4: memref<2x32xf32, #tpu.memory_space<vmem>>, %arg5: memref<1x32x256xf32, #tpu.memory_space<vmem>>) attributes {dimension_semantics = [#tpu.dimension_semantics<parallel>], iteration_bounds = array<i64: 2>, scalar_prefetch = 0 : i64, scratch_operands = 0 : i64, tpu.core_type = #tpu.core_type<tc>, window_params = [{transform_indices = @transform_0, window_bounds = array<i64: 1, 32, 256>}, {pipeline_mode = #tpu.pipeline_mode<synchronous>, transform_indices = @transform_1, window_bounds = array<i64: 32, 256>}, {pipeline_mode = #tpu.pipeline_mode<synchronous>, transform_indices = @transform_2, window_bounds = array<i64: 32, 2>}, {pipeline_mode = #tpu.pipeline_mode<synchronous>, transform_indices = @transform_3, window_bounds = array<i64: 2, 32>}, {transform_indices = @transform_4, window_bounds = array<i64: 1, 32, 256>}]} {
    %c0 = arith.constant 0 : index
    %c0_0 = arith.constant 0 : index
    %c0_1 = arith.constant 0 : index
    %0 = vector.load %arg1[%c0, %c0_0, %c0_1] : memref<1x32x256xf32, #tpu.memory_space<vmem>>, vector<1x32x256xf32>
    %c0_2 = arith.constant 0 : index
    %c0_3 = arith.constant 0 : index
    %1 = vector.load %arg2[%c0_2, %c0_3] : memref<32x256xf32, #tpu.memory_space<vmem>>, vector<32x256xf32>
    %2 = vector.shape_cast %1 : vector<32x256xf32> to vector<1x32x256xf32>
    %3 = arith.mulf %0, %2 : vector<1x32x256xf32>
    %cst = arith.constant dense<0.000000e+00> : vector<1x32xf32>
    %4 = vector.multi_reduction <add>, %3, %cst [2] : vector<1x32x256xf32> to vector<1x32xf32>
    %c0_4 = arith.constant 0 : index
    %c0_5 = arith.constant 0 : index
    %5 = vector.load %arg3[%c0_4, %c0_5] : memref<32x2xf32, #tpu.memory_space<vmem>>, vector<32x2xf32>
    %cst_6 = arith.constant dense<0.000000e+00> : vector<1x2xf32>
    %6 = tpu.matmul %4, %5, %cst_6 {dimension_numbers = #tpu.dot_dimension_numbers<[1], [0], [0], [1], [0, 0, 1, 1], [], []>} : vector<1x32xf32>, vector<32x2xf32>, vector<1x2xf32> -> vector<1x2xf32>
    %cst_7 = arith.constant 0.000000e+00 : f32
    %7 = vector.broadcast %cst_7 : f32 to vector<1x2xf32>
    %8 = arith.maximumf %6, %7 : vector<1x2xf32>
    %c0_8 = arith.constant 0 : index
    %c0_9 = arith.constant 0 : index
    %9 = vector.load %arg4[%c0_8, %c0_9] : memref<2x32xf32, #tpu.memory_space<vmem>>, vector<2x32xf32>
    %cst_10 = arith.constant dense<0.000000e+00> : vector<1x32xf32>
    %10 = tpu.matmul %8, %9, %cst_10 {dimension_numbers = #tpu.dot_dimension_numbers<[1], [0], [0], [1], [0, 0, 1, 1], [], []>} : vector<1x2xf32>, vector<2x32xf32>, vector<1x32xf32> -> vector<1x32xf32>
    %cst_11 = arith.constant 0.000000e+00 : f32
    %11 = vector.broadcast %cst_11 : f32 to vector<1x32xf32>
    %12 = arith.subf %11, %10 : vector<1x32xf32>
    %13 = math.exp %12 : vector<1x32xf32>
    %cst_12 = arith.constant 1.000000e+00 : f32
    %14 = vector.broadcast %cst_12 : f32 to vector<1x32xf32>
    %15 = arith.addf %14, %13 : vector<1x32xf32>
    %cst_13 = arith.constant 1.000000e+00 : f32
    %16 = vector.broadcast %cst_13 : f32 to vector<1x32xf32>
    %17 = arith.divf %16, %15 : vector<1x32xf32>
    %c0_14 = arith.constant 0 : index
    %c0_15 = arith.constant 0 : index
    %c0_16 = arith.constant 0 : index
    %18 = vector.load %arg1[%c0_14, %c0_15, %c0_16] : memref<1x32x256xf32, #tpu.memory_space<vmem>>, vector<1x32x256xf32>
    %19 = vector.shape_cast %17 : vector<1x32xf32> to vector<1x32x1xf32>
    %20 = vector.broadcast %19 : vector<1x32x1xf32> to vector<1x32x256xf32>
    %21 = arith.mulf %18, %20 : vector<1x32x256xf32>
    %c0_17 = arith.constant 0 : index
    %c0_18 = arith.constant 0 : index
    %c0_19 = arith.constant 0 : index
    %22 = vector.load %arg5[%c0_17, %c0_18, %c0_19] : memref<1x32x256xf32, #tpu.memory_space<vmem>>, vector<1x32x256xf32>
    tpu.vector_store %arg5[%c0_17, %c0_18, %c0_19], %21 {strides = array<i32>} : memref<1x32x256xf32, #tpu.memory_space<vmem>>, vector<1x32x256xf32>,
    return
  }
  func.func @transform_0(%arg0: i32) -> (i32, i32, i32) {
    %c0_i32 = arith.constant 0 : i32
    %c0_i32_0 = arith.constant 0 : i32
    %c0_i32_1 = arith.constant 0 : i32
    return %arg0, %c0_i32, %c0_i32_0 : i32, i32, i32
  }
  func.func @transform_1(%arg0: i32) -> (i32, i32) {
    %c0_i32 = arith.constant 0 : i32
    %c0_i32_0 = arith.constant 0 : i32
    %c0_i32_1 = arith.constant 0 : i32
    return %c0_i32, %c0_i32_0 : i32, i32
  }
  func.func @transform_2(%arg0: i32) -> (i32, i32) {
    %c0_i32 = arith.constant 0 : i32
    %c0_i32_0 = arith.constant 0 : i32
    %c0_i32_1 = arith.constant 0 : i32
    return %c0_i32, %c0_i32_0 : i32, i32
  }
  func.func @transform_3(%arg0: i32) -> (i32, i32) {
    %c0_i32 = arith.constant 0 : i32
    %c0_i32_0 = arith.constant 0 : i32
    %c0_i32_1 = arith.constant 0 : i32
    return %c0_i32, %c0_i32_0 : i32, i32
  }
  func.func @transform_4(%arg0: i32) -> (i32, i32, i32) {
    %c0_i32 = arith.constant 0 : i32
    %c0_i32_0 = arith.constant 0 : i32
    %c0_i32_1 = arith.constant 0 : i32
    return %arg0, %c0_i32, %c0_i32_0 : i32, i32, i32
  }
}

</mosaic_0001>

<llo_original>
// kernel: tpu_custom_call.1
$region0: #{tpu_custom_call.1}
  #allocation0 [shape = 'u32[]', space=smem, size = 0x4, offset = 0x4, fixed_abs, tag = 'smem constant byte address 0x4 - core index']
  #allocation1 [shape = 'u32[144,128]{1,0:T(1,128)}', space=vmem, size = 0x12000, scoped, tag = 'internal scratch']
  %s0 = inlined_call_operand.hbm [shape: f32[2,32,256], index: 0, kind: input, shape index: {}]
  %s1 = inlined_call_operand.hbm [shape: f32[32,256], index: 1, kind: input, shape index: {}]
  %s2 = inlined_call_operand.vmem [shape: f32[32,2], index: 2, kind: input, shape index: {}]
  %s3 = inlined_call_operand.vmem [shape: f32[2,32], index: 3, kind: input, shape index: {}]
  %s4 = inlined_call_operand.hbm [shape: f32[2,32,256], index: 4, kind: output, shape index: {}]
  %s5 = sld [smem:[#allocation0]]
  $region57: #{tpu_custom_call.1} parent=0
    _
  %s7 = ssub.s32 1, %s5
  %s8 = scalar_select 0, %s7, %s5
  $region1: #{tpu_custom_call.1} parent=0
    #allocation2 [shape = 'u8[65536]{0}', space=vmem, size = 0x10000, scoped, tag = 'input window, operand 0']
    #allocation3 [shape = 's32[2]{0}', space=sflag, size = 0x8, scoped, tag = 'scoped memory for tpu_custom_call.1']
    #allocation4 [shape = 's32[2]{0}', space=sflag, size = 0x8, scoped, tag = 'scoped memory for tpu_custom_call.1']
    #allocation5 [shape = 'u8[32768]{0}', space=vmem, size = 0x8000, scoped, tag = 'input window, operand 1, single buffered']
    #allocation6 [shape = 's32[1]{0}', space=sflag, size = 0x4, scoped, tag = 'scoped memory for tpu_custom_call.1']
    #allocation7 [shape = 'u8[65536]{0}', space=vmem, size = 0x10000, scoped, tag = 'output window, operand 0']
    %9 = vsyncpa [#allocation3], 0
    %s10 = scalar_lea.sflag [#allocation3], 1
    %11 = vsyncpa %s10, 0
    %12 = vsyncpa [#allocation6], 0
    %13 = vsyncpa [#allocation4], 0
    %s14 = scalar_lea.sflag [#allocation4], 1
    %15 = vsyncpa %s14, 0
    loop: start=0, step=1, limit=4
    $region2: #{tpu_custom_call.1} parent=1 // loop_pre_header
      _
    $region3: #{tpu_custom_call.1} parent=1 // loop_header
      %s17 = sphi 0, %s21
      %p18 = scmp.ge.s32.totalorder %s17, 4
      %s27 = sphi 0, %s29
      %s30 = sphi 0, %s27
      %s31 = sphi 0, %s30
      %s47 = sphi 0, %s31
      %s51 = sphi 0, %s51
      %s53 = sphi 0, %s51
      %s54 = sphi 0, %s53
      %s68 = sphi 0, %s54
      %s72 = sphi 0, %s72
      %s74 = sphi 0, %s72
      %s75 = sphi 0, %s74
      %s89 = sphi 0, %s75
      %s93 = sphi 0, %s93
      %s95 = sphi 0, %s93
      %s96 = sphi 0, %s95
      %s110 = sphi 0, %s96
      %s116 = sphi 0, %s118
      %s119 = sphi 0, %s116
      %s120 = sphi 0, %s119
      %s136 = sphi 0, %s120
    $region4: #{tpu_custom_call.1} parent=1 // loop_header_branch
      %20 = sbr.rel (%p18) target = $region8
    $region5: #{tpu_custom_call.1} parent=1 // loop_body
      %s22 = ssub.s32 %s17, 1
      %s23 = ssub.s32 %s17, 2
      %s24 = sadd.s32 %s17, 1
      %s25 = ssub.s32 %s17, %s24
      %p26 = scmp.eq.s32.totalorder %s25, 0
      %s28 = sadd.s32 %s27, 1
      %s29 = scalar_select %p26, %s27, %s28
      %p32 = pneg %p26
      %p33 = scmp.eq.s32.totalorder %s17, 1
      %p34 = por %p32, %p33
      %p35 = scmp.ne.s32.totalorder %s27, %s30
      %p36 = scmp.eq.s32.totalorder %s17, 0
      %p37 = por %p35, %p36
      %p38 = scmp.ne.s32.totalorder %s27, %s30
      %p39 = scmp.eq.s32.totalorder %s22, 1
      %p40 = por %p38, %p39
      %p41 = scmp.ne.s32.totalorder %s30, %s31
      %p42 = scmp.eq.s32.totalorder %s22, 0
      %p43 = por %p41, %p42
      %p44 = scmp.ne.s32.totalorder %s30, %s31
      %p45 = scmp.eq.s32.totalorder %s23, 1
      %p46 = por %p44, %p45
      %p48 = scmp.ne.s32.totalorder %s31, %s47
      %p49 = scmp.eq.s32.totalorder %s23, 0
      %p50 = por %p48, %p49
      %s52 = sadd.s32 %s51, 1
      %p55 = scmp.eq.s32.totalorder %s17, 1
      %p56 = scmp.ne.s32.totalorder %s51, %s53
      %p57 = scmp.eq.s32.totalorder %s17, 0
      %p58 = por %p56, %p57
      %p59 = scmp.ne.s32.totalorder %s51, %s53
      %p60 = scmp.eq.s32.totalorder %s22, 1
      %p61 = por %p59, %p60
      %p62 = scmp.ne.s32.totalorder %s53, %s54
      %p63 = scmp.eq.s32.totalorder %s22, 0
      %p64 = por %p62, %p63
      %p65 = scmp.ne.s32.totalorder %s53, %s54
      %p66 = scmp.eq.s32.totalorder %s23, 1
      %p67 = por %p65, %p66
      %p69 = scmp.ne.s32.totalorder %s54, %s68
      %p70 = scmp.eq.s32.totalorder %s23, 0
      %p71 = por %p69, %p70
      %s73 = sadd.s32 %s72, 1
      %p76 = scmp.eq.s32.totalorder %s17, 1
      %p77 = scmp.ne.s32.totalorder %s72, %s74
      %p78 = scmp.eq.s32.totalorder %s17, 0
      %p79 = por %p77, %p78
      %p80 = scmp.ne.s32.totalorder %s72, %s74
      %p81 = scmp.eq.s32.totalorder %s22, 1
      %p82 = por %p80, %p81
      %p83 = scmp.ne.s32.totalorder %s74, %s75
      %p84 = scmp.eq.s32.totalorder %s22, 0
      %p85 = por %p83, %p84
      %p86 = scmp.ne.s32.totalorder %s74, %s75
      %p87 = scmp.eq.s32.totalorder %s23, 1
      %p88 = por %p86, %p87
      %p90 = scmp.ne.s32.totalorder %s75, %s89
      %p91 = scmp.eq.s32.totalorder %s23, 0
      %p92 = por %p90, %p91
      %s94 = sadd.s32 %s93, 1
      %p97 = scmp.eq.s32.totalorder %s17, 1
      %p98 = scmp.ne.s32.totalorder %s93, %s95
      %p99 = scmp.eq.s32.totalorder %s17, 0
      %p100 = por %p98, %p99
      %p101 = scmp.ne.s32.totalorder %s93, %s95
      %p102 = scmp.eq.s32.totalorder %s22, 1
      %p103 = por %p101, %p102
      %p104 = scmp.ne.s32.totalorder %s95, %s96
      %p105 = scmp.eq.s32.totalorder %s22, 0
      %p106 = por %p104, %p105
      %p107 = scmp.ne.s32.totalorder %s95, %s96
      %p108 = scmp.eq.s32.totalorder %s23, 1
      %p109 = por %p107, %p108
      %p111 = scmp.ne.s32.totalorder %s96, %s110
      %p112 = scmp.eq.s32.totalorder %s23, 0
      %p113 = por %p111, %p112
      %s114 = ssub.s32 %s17, %s24
      %p115 = scmp.eq.s32.totalorder %s114, 0
      %s117 = sadd.s32 %s116, 1
      %s118 = scalar_select %p115, %s116, %s117
      %p121 = pneg %p115
      %p122 = scmp.eq.s32.totalorder %s17, 1
      %p123 = por %p121, %p122
      %p124 = scmp.ne.s32.totalorder %s116, %s119
      %p125 = scmp.eq.s32.totalorder %s17, 0
      %p126 = por %p124, %p125
      %p127 = scmp.ne.s32.totalorder %s116, %s119
      %p128 = scmp.eq.s32.totalorder %s22, 1
      %p129 = por %p127, %p128
      %p130 = scmp.ne.s32.totalorder %s119, %s120
      %p131 = scmp.eq.s32.totalorder %s22, 0
      %p132 = por %p130, %p131
      %p133 = scmp.ne.s32.totalorder %s119, %s120
      %p134 = scmp.eq.s32.totalorder %s23, 1
      %p135 = por %p133, %p134
      %p137 = scmp.ne.s32.totalorder %s120, %s136
      %p138 = scmp.eq.s32.totalorder %s23, 0
      %p139 = por %p137, %p138
      %p140 = scmp.le.s32.totalorder 1, %s17
      %p141 = scmp.lt.s32.totalorder %s17, 3
      %p142 = pnand %p140, %p141
      %p143 = pneg %p142
      // Predicated region
      $region9: #{tpu_custom_call.1} parent=5 // pred_check
        _
      $region10: #{tpu_custom_call.1} parent=5 // pred_check_branch
        %145 = sbr.rel (%p142) target = $region12
      $region11: #{tpu_custom_call.1} parent=5 // pred_region
        %s146 = ssub.s32 %s17, 1
        // Predicated region
        $region13: #{tpu_custom_call.1} parent=11 // pred_check
          %p147 = pneg %p64
        $region14: #{tpu_custom_call.1} parent=11 // pred_check_branch
          %149 = sbr.rel (%p147) target = $region16
        $region15: #{tpu_custom_call.1} parent=11 // pred_region
          %s151 = ssub.s32 1024, 1024
          %152 = vsyncadd [#allocation6], %s151
          %s153 = sshll.u32 [#allocation5], 4
          %s154 = int_to_ptr.vmem [resolvable:$true] %s153
          %159 = dma.hbm_to_vmem [thread:$0]  %s1, 1024, %s154, [#allocation6], 256, 256, 16
        $region16: #{tpu_custom_call.1} parent=11 // pred_fallthru
          _
        // Predicated region
        $region17: #{tpu_custom_call.1} parent=11 // pred_check
          %p160 = pneg %p85
        $region18: #{tpu_custom_call.1} parent=11 // pred_check_branch
          %162 = sbr.rel (%p160) target = $region20
        $region19: #{tpu_custom_call.1} parent=11 // pred_region
          _
        $region20: #{tpu_custom_call.1} parent=11 // pred_fallthru
          _
        // Predicated region
        $region21: #{tpu_custom_call.1} parent=11 // pred_check
          %p163 = pneg %p106
        $region22: #{tpu_custom_call.1} parent=11 // pred_check_branch
          %165 = sbr.rel (%p163) target = $region24
        $region23: #{tpu_custom_call.1} parent=11 // pred_region
          _
        $region24: #{tpu_custom_call.1} parent=11 // pred_fallthru
          _
      $region12: #{tpu_custom_call.1} parent=5 // pred_fallthru
        _
      %p166 = scmp.lt.s32.totalorder %s17, 2
      // Predicated region
      $region25: #{tpu_custom_call.1} parent=5 // pred_check
        %p167 = pneg %p166
      $region26: #{tpu_custom_call.1} parent=5 // pred_check_branch
        %169 = sbr.rel (%p167) target = $region28
      $region27: #{tpu_custom_call.1} parent=5 // pred_region
        // Predicated region
        $region29: #{tpu_custom_call.1} parent=27 // pred_check
          %p170 = pneg %p37
        $region30: #{tpu_custom_call.1} parent=27 // pred_check_branch
          %172 = sbr.rel (%p170) target = $region32
        $region31: #{tpu_custom_call.1} parent=27 // pred_region
          %s173 = sand.u32 %s27, 1
          %s174 = scalar_lea.sflag [#allocation3], %s173
          %s175 = sand.u32 %s27, 1
          %s176 = smul.addr %s175, 64
          %s177 = scalar_lea.vmem [#allocation2], %s176
          %s179 = ssub.s32 1024, 1024
          %180 = vsyncadd %s174, %s179
          %s181 = smul.addr %s17, 8
          %s182 = smul.addr %s181, 128
          %s183 = scalar_lea.hbm %s0, %s182
          %s184 = sshll.u32 %s177, 4
          %s185 = int_to_ptr.vmem [resolvable:$true] %s184
          %190 = dma.hbm_to_vmem [thread:$0]  %s183, 1024, %s185, %s174, 256, 256, 16
        $region32: #{tpu_custom_call.1} parent=27 // pred_fallthru
          _
      $region28: #{tpu_custom_call.1} parent=5 // pred_fallthru
        _
      %p191 = scmp.le.s32.totalorder 1, %s17
      %p192 = scmp.lt.s32.totalorder %s17, 3
      %p193 = pnand %p191, %p192
      %p194 = pneg %p193
      // Predicated region
      $region33: #{tpu_custom_call.1} parent=5 // pred_check
        _
      $region34: #{tpu_custom_call.1} parent=5 // pred_check_branch
        %196 = sbr.rel (%p193) target = $region36
      $region35: #{tpu_custom_call.1} parent=5 // pred_region
        %s197 = ssub.s32 %s17, 1
        %s198 = sand.u32 %s30, 1
        %s199 = scalar_lea.sflag [#allocation3], %s198
        %s200 = sand.u32 %s30, 1
        %s201 = smul.addr %s200, 64
        %s202 = scalar_lea.vmem [#allocation2], %s201
        // Predicated region
        $region37: #{tpu_custom_call.1} parent=35 // pred_check
          %p203 = pneg %p43
        $region38: #{tpu_custom_call.1} parent=35 // pred_check_branch
          %205 = sbr.rel (%p203) target = $region40
        $region39: #{tpu_custom_call.1} parent=35 // pred_region
          %206 = dma.done %s199, 1024
        $region40: #{tpu_custom_call.1} parent=35 // pred_fallthru
          _
        // Predicated region
        $region41: #{tpu_custom_call.1} parent=35 // pred_check
          %p207 = pneg %p64
        $region42: #{tpu_custom_call.1} parent=35 // pred_check_branch
          %209 = sbr.rel (%p207) target = $region44
        $region43: #{tpu_custom_call.1} parent=35 // pred_region
          %210 = dma.done [#allocation6], 1024
        $region44: #{tpu_custom_call.1} parent=35 // pred_fallthru
          _
        %s211 = sand.u32 %s30, 1
        %s212 = scalar_lea.sflag [#allocation3], %s211
        %s213 = sand.u32 %s30, 1
        %s214 = smul.addr %s213, 64
        %s215 = scalar_lea.vmem [#allocation2], %s214
        %p216 = pneg %p43
        %p217 = pneg %p40
        %p218 = pneg %p64
        %p219 = pneg %p61
        %p220 = pneg %p85
        %p221 = pneg %p82
        %p222 = pneg %p106
        %p223 = pneg %p103
        %p224 = pneg %p132
        %p225 = pneg %p129
        %s226 = sand.u32 %s119, 1
        %s227 = scalar_lea.sflag [#allocation4], %s226
        %s228 = sand.u32 %s119, 1
        %s229 = smul.addr %s228, 64
        %s230 = scalar_lea.vmem [#allocation7], %s229
        %v231 = vld [vmem:[%s202] sm:$0xff]
        %v232 = vld [vmem:[%s202 + $0x8] sm:$0xff]
        %v233 = vld [vmem:[%s202 + $0x10] sm:$0xff]
        %v234 = vld [vmem:[%s202 + $0x18] sm:$0xff]
        %v235 = vld [vmem:[%s202 + $0x20] sm:$0xff]
        %v236 = vld [vmem:[%s202 + $0x28] sm:$0xff]
        %v237 = vld [vmem:[%s202 + $0x30] sm:$0xff]
        %v238 = vld [vmem:[%s202 + $0x38] sm:$0xff]
        %v239 = vld [vmem:[#allocation5] sm:$0xff]
        %v240 = vld [vmem:[#allocation5 + $0x8] sm:$0xff]
        %v241 = vld [vmem:[#allocation5 + $0x10] sm:$0xff]
        %v242 = vld [vmem:[#allocation5 + $0x18] sm:$0xff]
        %v243 = vld [vmem:[#allocation5 + $0x20] sm:$0xff]
        %v244 = vld [vmem:[#allocation5 + $0x28] sm:$0xff]
        %v245 = vld [vmem:[#allocation5 + $0x30] sm:$0xff]
        %v246 = vld [vmem:[#allocation5 + $0x38] sm:$0xff]
        %v247 = vmul.f32 %v231, %v239
        %v248 = vmul.f32 %v232, %v240
        %v249 = vmul.f32 %v233, %v241
        %v250 = vmul.f32 %v234, %v242
        %v251 = vmul.f32 %v235, %v243
        %v252 = vmul.f32 %v236, %v244
        %v253 = vmul.f32 %v237, %v245
        %v254 = vmul.f32 %v238, %v246
        %v255 = vadd.f32 %v247, %v248
        %256 = vadd.xlane.f32.xlu0 %v255
        %v257 = vpop.xlane.xlu0 %256
        %v258 = vadd.f32 %v249, %v250
        %259 = vadd.xlane.f32.xlu0 %v258
        %v260 = vpop.xlane.xlu0 %259
        %v261 = vadd.f32 %v251, %v252
        %262 = vadd.xlane.f32.xlu0 %v261
        %v263 = vpop.xlane.xlu0 %262
        %v264 = vadd.f32 %v253, %v254
        %265 = vadd.xlane.f32.xlu0 %v264
        %v266 = vpop.xlane.xlu0 %265
        %v267 = vld [vmem:[%s2] sm:$0xff]
        %v268 = vld [vmem:[%s2 + $0x8] sm:$0xff]
        %v269 = vld [vmem:[%s2 + $0x10] sm:$0xff]
        %v270 = vld [vmem:[%s2 + $0x18] sm:$0xff]
        %v275 = vlaneseq
        %v276 = vand.u32 %v275, 127
        %v277 = vlaneseq
        %v278 = vshrl.u32 %v277, 7
        %v279 = vsub.s32 %v276, %v278
        %v280 = vrot.slane %v257, %v279
        %v281 = vadd.s32 %v276, 4294967288
        %v282 = vlaneseq
        %v283 = vshrl.u32 %v282, 7
        %v284 = vsub.s32 %v281, %v283
        %v285 = vrot.slane %v260, %v284
        %vm286 = vcmask 130112
        %v287 = vsel %vm286, %v285, %v280
        %v288 = vadd.s32 %v276, 4294967280
        %v289 = vlaneseq
        %v290 = vshrl.u32 %v289, 7
        %v291 = vsub.s32 %v288, %v290
        %v292 = vrot.slane %v263, %v291
        %vm293 = vcmask 195712
        %v294 = vsel %vm293, %v292, %v287
        %v295 = vadd.s32 %v276, 4294967272
        %v296 = vlaneseq
        %v297 = vshrl.u32 %v296, 7
        %v298 = vsub.s32 %v295, %v297
        %v299 = vrot.slane %v266, %v298
        %vm300 = vcmask 261312
        %v301 = vsel %vm300, %v299, %v294
        %vm302 = vcmask 261120
        %v303 = vsel %vm302, %v301, 0
        %305 = vmatprep.subr.mxu0 0.0
        %306 = vmatpush1.msra.mxu0 0.0
        %307 = vmatprep.subr.mxu0 0.0
        %308 = vmatpush1.msra.mxu0 0.0
        %309 = vmatprep.subr.mxu0 0.0
        %310 = vmatpush1.msra.mxu0 0.0
        %311 = vmatprep.subr.mxu0 0.0
        %312 = vmatpush1.msra.mxu0 0.0
        %313 = vmatprep.subr.mxu0 0.0
        %314 = vmatpush1.msra.mxu0 0.0
        %315 = vmatprep.subr.mxu0 0.0
        %316 = vmatpush1.msra.mxu0 0.0
        %317 = vmatprep.subr.mxu0 0.0
        %318 = vmatpush1.msra.mxu0 0.0
        %319 = vmatprep.subr.mxu0 0.0
        %320 = vmatpush1.msra.mxu0 0.0
        %321 = vmatprep.subr.mxu0 0.0
        %322 = vmatpush1.msra.mxu0 0.0
        %323 = vmatprep.subr.mxu0 0.0
        %324 = vmatpush1.msra.mxu0 0.0
        %325 = vmatprep.subr.mxu0 0.0
        %326 = vmatpush1.msra.mxu0 0.0
        %327 = vmatprep.subr.mxu0 0.0
        %328 = vmatpush1.msra.mxu0 0.0
        %329 = vmatprep.subr.mxu0 0.0
        %330 = vmatpush1.msra.mxu0 %v270
        %331 = vmatprep.subr.mxu0 0.0
        %332 = vmatpush1.msra.mxu0 %v269
        %333 = vmatprep.subr.mxu0 0.0
        %334 = vmatpush1.msra.mxu0 %v268
        %335 = vmatprep.subr.mxu0 0.0
        %336 = vmatpush1.msra.mxu0 %v267
        %337 = vmatprep.subr.mxu0 0.0
        %338 = vmatpush2.msra.mxu0 0.0
        %339 = vmatprep.subr.mxu0 0.0
        %340 = vmatpush2.msra.mxu0 0.0
        %341 = vmatprep.subr.mxu0 0.0
        %342 = vmatpush2.msra.mxu0 0.0
        %343 = vmatprep.subr.mxu0 0.0
        %344 = vmatpush2.msra.mxu0 0.0
        %345 = vmatprep.subr.mxu0 0.0
        %346 = vmatpush2.msra.mxu0 0.0
        %347 = vmatprep.subr.mxu0 0.0
        %348 = vmatpush2.msra.mxu0 0.0
        %349 = vmatprep.subr.mxu0 0.0
        %350 = vmatpush2.msra.mxu0 0.0
        %351 = vmatprep.subr.mxu0 0.0
        %352 = vmatpush2.msra.mxu0 0.0
        %353 = vmatprep.subr.mxu0 0.0
        %354 = vmatpush2.msra.mxu0 0.0
        %355 = vmatprep.subr.mxu0 0.0
        %356 = vmatpush2.msra.mxu0 0.0
        %357 = vmatprep.subr.mxu0 0.0
        %358 = vmatpush2.msra.mxu0 0.0
        %359 = vmatprep.subr.mxu0 0.0
        %360 = vmatpush2.msra.mxu0 0.0
        %361 = vmatprep.subr.mxu0 0.0
        %362 = vmatpush2.msra.mxu0 0.0
        %363 = vmatprep.subr.mxu0 0.0
        %364 = vmatpush2.msra.mxu0 0.0
        %365 = vmatprep.subr.mxu0 0.0
        %366 = vmatpush2.msra.mxu0 0.0
        %367 = vmatprep.subr.mxu0 0.0
        %368 = vmatpush2.msra.mxu0 0.0
        %369 = vmatprep.mubr.f32.mxu0 0.0
        %370 = vmatmul.mubr.f32.gmra.mxu0 %v303
        %v371 = vpop.f32.mrf.mxu0
        %v372 = vadd.f32 0.0, %v371
        %v373 = vpop.f32.mrf.mxu0
        %374 = vdwg.mxu0
        %v375 = vmax.f32 %v372, 0.0
        %v376 = vld [vmem:[%s3] sm:$0x3]
        %vm377 = vcmask 15360
        %v379 = vsel %vm377, %v375, 0
        %vm381 = vcmask 1041408
        %v383 = vsel %vm381, %v376, 0
        %385 = vmatprep.subr.mxu0 0.0
        %386 = vmatpush1.msra.mxu0 0.0
        %387 = vmatprep.subr.mxu0 0.0
        %388 = vmatpush1.msra.mxu0 0.0
        %389 = vmatprep.subr.mxu0 0.0
        %390 = vmatpush1.msra.mxu0 0.0
        %391 = vmatprep.subr.mxu0 0.0
        %392 = vmatpush1.msra.mxu0 0.0
        %393 = vmatprep.subr.mxu0 0.0
        %394 = vmatpush1.msra.mxu0 0.0
        %395 = vmatprep.subr.mxu0 0.0
        %396 = vmatpush1.msra.mxu0 0.0
        %397 = vmatprep.subr.mxu0 0.0
        %398 = vmatpush1.msra.mxu0 0.0
        %399 = vmatprep.subr.mxu0 0.0
        %400 = vmatpush1.msra.mxu0 0.0
        %401 = vmatprep.subr.mxu0 0.0
        %402 = vmatpush1.msra.mxu0 0.0
        %403 = vmatprep.subr.mxu0 0.0
        %404 = vmatpush1.msra.mxu0 0.0
        %405 = vmatprep.subr.mxu0 0.0
        %406 = vmatpush1.msra.mxu0 0.0
        %407 = vmatprep.subr.mxu0 0.0
        %408 = vmatpush1.msra.mxu0 0.0
        %409 = vmatprep.subr.mxu0 0.0
        %410 = vmatpush1.msra.mxu0 0.0
        %411 = vmatprep.subr.mxu0 0.0
        %412 = vmatpush1.msra.mxu0 0.0
        %413 = vmatprep.subr.mxu0 0.0
        %414 = vmatpush1.msra.mxu0 0.0
        %415 = vmatprep.subr.mxu0 0.0
        %416 = vmatpush1.msra.mxu0 %v383
        %417 = vmatprep.subr.mxu0 0.0
        %418 = vmatpush2.msra.mxu0 0.0
        %419 = vmatprep.subr.mxu0 0.0
        %420 = vmatpush2.msra.mxu0 0.0
        %421 = vmatprep.subr.mxu0 0.0
        %422 = vmatpush2.msra.mxu0 0.0
        %423 = vmatprep.subr.mxu0 0.0
        %424 = vmatpush2.msra.mxu0 0.0
        %425 = vmatprep.subr.mxu0 0.0
        %426 = vmatpush2.msra.mxu0 0.0
        %427 = vmatprep.subr.mxu0 0.0
        %428 = vmatpush2.msra.mxu0 0.0
        %429 = vmatprep.subr.mxu0 0.0
        %430 = vmatpush2.msra.mxu0 0.0
        %431 = vmatprep.subr.mxu0 0.0
        %432 = vmatpush2.msra.mxu0 0.0
        %433 = vmatprep.subr.mxu0 0.0
        %434 = vmatpush2.msra.mxu0 0.0
        %435 = vmatprep.subr.mxu0 0.0
        %436 = vmatpush2.msra.mxu0 0.0
        %437 = vmatprep.subr.mxu0 0.0
        %438 = vmatpush2.msra.mxu0 0.0
        %439 = vmatprep.subr.mxu0 0.0
        %440 = vmatpush2.msra.mxu0 0.0
        %441 = vmatprep.subr.mxu0 0.0
        %442 = vmatpush2.msra.mxu0 0.0
        %443 = vmatprep.subr.mxu0 0.0
        %444 = vmatpush2.msra.mxu0 0.0
        %445 = vmatprep.subr.mxu0 0.0
        %446 = vmatpush2.msra.mxu0 0.0
        %447 = vmatprep.subr.mxu0 0.0
        %448 = vmatpush2.msra.mxu0 0.0
        %449 = vmatprep.mubr.f32.mxu0 0.0
        %450 = vmatmul.mubr.f32.gmra.mxu0 %v379
        %v451 = vpop.f32.mrf.mxu0
        %v452 = vadd.f32 0.0, %v451
        %v453 = vpop.f32.mrf.mxu0
        %454 = vdwg.mxu0
        %v455 = vsub.f32 0.0, %v452
        %v456 = vmul.f32 %v455, 1.442695
        %v457 = vpow.pop %v456
        %v458 = vadd.f32 %v457, 1.0
        %v459 = vrcp.pop %v458
        %v460 = vmul.f32 1.0, %v459
        %v461 = vlaneseq
        %v462 = vshrl.u32 %v461, 7
        %v463 = vsub.s32 0, %v462
        %v464 = vrot.slane %v460, %v463
        %466 = vbcast.lane.b32.xlu0 %v464, 256
        %v467 = vpop.permute.xlu0 %466
        %s469 = sor.u32 256, 8
        %470 = vbcast.lane.b32.xlu0 %v464, %s469
        %v471 = vpop.permute.xlu0 %470
        %s473 = sor.u32 256, 16
        %474 = vbcast.lane.b32.xlu0 %v464, %s473
        %v475 = vpop.permute.xlu0 %474
        %s477 = sor.u32 256, 24
        %478 = vbcast.lane.b32.xlu0 %v464, %s477
        %v479 = vpop.permute.xlu0 %478
        %v480 = vmul.f32 %v231, %v467
        %v481 = vmul.f32 %v232, %v467
        %v482 = vmul.f32 %v233, %v471
        %v483 = vmul.f32 %v234, %v471
        %v484 = vmul.f32 %v235, %v475
        %v485 = vmul.f32 %v236, %v475
        %v486 = vmul.f32 %v237, %v479
        %v487 = vmul.f32 %v238, %v479
        %488 = vst [vmem:[%s230] sm:$0xff] %v480
        %489 = vst [vmem:[%s230 + $0x8] sm:$0xff] %v481
        %490 = vst [vmem:[%s230 + $0x10] sm:$0xff] %v482
        %491 = vst [vmem:[%s230 + $0x18] sm:$0xff] %v483
        %492 = vst [vmem:[%s230 + $0x20] sm:$0xff] %v484
        %493 = vst [vmem:[%s230 + $0x28] sm:$0xff] %v485
        %494 = vst [vmem:[%s230 + $0x30] sm:$0xff] %v486
        %495 = vst [vmem:[%s230 + $0x38] sm:$0xff] %v487
        %s496 = sand.u32 %s119, 1
        %s497 = scalar_lea.sflag [#allocation4], %s496
        %s498 = sand.u32 %s119, 1
        %s499 = smul.addr %s498, 64
        %s500 = scalar_lea.vmem [#allocation7], %s499
        // Predicated region
        $region45: #{tpu_custom_call.1} parent=35 // pred_check
          %p501 = pneg %p129
        $region46: #{tpu_custom_call.1} parent=35 // pred_check_branch
          %503 = sbr.rel (%p501) target = $region48
        $region47: #{tpu_custom_call.1} parent=35 // pred_region
          %s505 = ssub.s32 1024, 1024
          %506 = vsyncadd %s497, %s505
          %s507 = smul.addr %s22, 8
          %s508 = smul.addr %s507, 128
          %s509 = scalar_lea.hbm %s4, %s508
          %s510 = sshll.u32 %s500, 4
          %s511 = int_to_ptr.vmem [resolvable:$true] %s510
          %516 = dma.vmem_to_hbm [thread:$0]  %s511, 1024, %s509, %s497, 256, 256, 16
        $region48: #{tpu_custom_call.1} parent=35 // pred_fallthru
          _
      $region36: #{tpu_custom_call.1} parent=5 // pred_fallthru
        _
      %p517 = scmp.le.s32.totalorder 2, %s17
      // Predicated region
      $region49: #{tpu_custom_call.1} parent=5 // pred_check
        %p518 = pneg %p517
      $region50: #{tpu_custom_call.1} parent=5 // pred_check_branch
        %520 = sbr.rel (%p518) target = $region52
      $region51: #{tpu_custom_call.1} parent=5 // pred_region
        %s521 = ssub.s32 %s17, 2
        // Predicated region
        $region53: #{tpu_custom_call.1} parent=51 // pred_check
          %p522 = pneg %p135
        $region54: #{tpu_custom_call.1} parent=51 // pred_check_branch
          %524 = sbr.rel (%p522) target = $region56
        $region55: #{tpu_custom_call.1} parent=51 // pred_region
          %s525 = sand.u32 %s120, 1
          %s526 = scalar_lea.sflag [#allocation4], %s525
          %s527 = sand.u32 %s120, 1
          %s528 = smul.addr %s527, 64
          %s529 = scalar_lea.vmem [#allocation7], %s528
          %530 = dma.done %s526, 1024
        $region56: #{tpu_custom_call.1} parent=51 // pred_fallthru
          _
      $region52: #{tpu_custom_call.1} parent=5 // pred_fallthru
        _
    $region6: #{tpu_custom_call.1} parent=1 // loop_footer
      %s21 = sadd.s32 1, %s17
    $region7: #{tpu_custom_call.1} parent=1 // loop_footer_branch
      %16 = sbr.rel target = $region3
    $region8: #{tpu_custom_call.1} parent=1 // loop_exit
      _
    %531 = vsyncpa [#allocation3], 1
    %s532 = scalar_lea.sflag [#allocation3], 1
    %533 = vsyncpa %s532, 1
    %534 = vsyncpa [#allocation6], 1
    %535 = vsyncpa [#allocation4], 1
    %s536 = scalar_lea.sflag [#allocation4], 1
    %537 = vsyncpa %s536, 1

</llo_original>
